<compile_context>
chip_gen: v7x
topology: tpu7x:2x2x1
jax: 0.10.0
libtpu: 0.0.40
codegen_flags: <defaults>
</compile_context>

<pallas_src>
import jax
import jax.numpy as jnp
from jax.experimental import pallas as pl
from jax.experimental.pallas import tpu as pltpu

MXU_DTYPE = jnp.bfloat16  # MXU operand dtype (f32 accumulation via preferred_element_type)


def _round_up(x, m):
    return (x + m - 1) // m * m


def _down_wt_kernel(act_ref, w_ref, bias_ref, o_ref):
    # act_ref : [1, 4C, tile_s]  bf16   (corners a|b|c|d stacked on the channel axis)
    # w_ref   : [tile_n, 4C]     bf16   (Haar + BN-scale folded 1x1-conv weight)
    # bias_ref: [tile_n, 1]      f32    (conv-bias + BN folded)
    # o_ref   : [1, tile_n, tile_s] f32
    z = jnp.dot(w_ref[...], act_ref[0], preferred_element_type=jnp.float32)
    z = z + bias_ref[...]                      # broadcast [tile_n,1] over lanes
    o_ref[0] = jnp.maximum(z, 0.0).astype(o_ref.dtype)


@jax.jit
def down_wt_forward(x, conv_w, conv_b, gamma, beta, running_mean, running_var, eps):
    """x: [B, C, H, W] NCHW -> [B, out_ch, H/2, W/2] NCHW (eval-mode Down_wt)."""
    B, C, H, W = x.shape
    assert H % 2 == 0 and W % 2 == 0, "Down_wt kernel requires even H, W"
    Ho, Wo = H // 2, W // 2
    S = Ho * Wo
    out_ch = conv_w.shape[0]

    # ---- corner extraction, NCHW-preserving (no big transpose) -----------------
    # Strided slices keep W/spatial on the minor (lane) axis; the concat + bf16
    # cast + pad fuse into one XLA pass.  act: [B, 4C, S] with channel order a,b,c,d.
    xb = x.reshape(B, C, Ho, 2, Wo, 2)
    a = xb[:, :, :, 0, :, 0]
    b = xb[:, :, :, 0, :, 1]
    c = xb[:, :, :, 1, :, 0]
    d = xb[:, :, :, 1, :, 1]
    act = jnp.concatenate([a, b, c, d], axis=1).reshape(B, 4 * C, S).astype(MXU_DTYPE)

    # ---- fold Haar + conv-bias + eval-mode BN into weight / bias (f32) ----------
    w_ll = conv_w[:, 0 * C:1 * C]
    w_h0 = conv_w[:, 1 * C:2 * C]
    w_h1 = conv_w[:, 2 * C:3 * C]
    w_h2 = conv_w[:, 3 * C:4 * C]
    wa = 0.5 * (w_ll + w_h0 + w_h1 + w_h2)     # coefficient of corner a
    wb = 0.5 * (w_ll + w_h0 - w_h1 - w_h2)     # corner b
    wc = 0.5 * (w_ll - w_h0 + w_h1 - w_h2)     # corner c
    wd = 0.5 * (w_ll - w_h0 - w_h1 + w_h2)     # corner d
    scale = gamma / jnp.sqrt(running_var + eps)                 # [out_ch]
    bias = beta + scale * (conv_b - running_mean)               # [out_ch]
    w_folded = scale[:, None] * jnp.concatenate([wa, wb, wc, wd], axis=1)  # [out_ch, 4C]

    # out_ch only needs sublane (8) alignment in this layout — no 128-lane padding waste.
    N8 = _round_up(out_ch, 8)
    w_folded = jnp.pad(w_folded, ((0, N8 - out_ch), (0, 0))).astype(MXU_DTYPE)
    bias_col = jnp.pad(bias, (0, N8 - out_ch)).reshape(N8, 1).astype(jnp.float32)

    # ---- tiling ------------------------------------------------------------------
    # Spatial (lane) axis: big tiles for the mem-bound regime; must divide S128.
    S128 = _round_up(S, 128)
    tile_s = next(cand for cand in (1024, 512, 256, 128)
                  if cand <= S128 and S128 % cand == 0)
    act = jnp.pad(act, ((0, 0), (0, 0), (0, S128 - S)))

    # Output-channel (sublane) axis of the weight/output blocks.
    if N8 <= 256:
        tile_n = N8
    else:
        tile_n = next(cand for cand in (512, 256, 128, 64, 32, 16, 8) if N8 % cand == 0)

    # Grid: batch / spatial tiles / out-channel tiles, all independent ("parallel")
    # so v7x megacore sharding applies.  N innermost so the (big) activation block
    # is fetched once per spatial tile; the (small) weight block streams per N step.
    grid = (B, S128 // tile_s, N8 // tile_n)

    out = pl.pallas_call(
        _down_wt_kernel,
        out_shape=jax.ShapeDtypeStruct((B, N8, S128), jnp.float32),
        grid=grid,
        in_specs=[
            pl.BlockSpec((1, 4 * C, tile_s), lambda bi, si, ni: (bi, 0, si)),
            pl.BlockSpec((tile_n, 4 * C), lambda bi, si, ni: (ni, 0)),
            pl.BlockSpec((tile_n, 1), lambda bi, si, ni: (ni, 0)),
        ],
        out_specs=pl.BlockSpec((1, tile_n, tile_s), lambda bi, si, ni: (bi, ni, si)),
        compiler_params=pltpu.CompilerParams(
            dimension_semantics=("parallel", "parallel", "parallel")),
    )(act, w_folded, bias_col)

    # Slice off padding and reshape straight to NCHW — no output transpose needed.
    return out[:, :out_ch, :S].reshape(B, out_ch, Ho, Wo)


def _reference(x, conv_w, conv_b, gamma, beta, running_mean, running_var, eps):
    """Pure-JAX f32 reference of the same (Haar -> 1x1 conv -> BN(eval) -> ReLU)."""
    B, C, H, W = x.shape
    Ho, Wo = H // 2, W // 2
    xb = x.reshape(B, C, Ho, 2, Wo, 2)
    a = xb[:, :, :, 0, :, 0]
    b = xb[:, :, :, 0, :, 1]
    c = xb[:, :, :, 1, :, 0]
    d = xb[:, :, :, 1, :, 1]
    ll = (a + b + c + d) * 0.5
    h0 = (a + b - c - d) * 0.5
    h1 = (a - b + c - d) * 0.5
    h2 = (a - b - c + d) * 0.5
    cat = jnp.concatenate([ll, h0, h1, h2], axis=1)            # [B, 4C, Ho, Wo]
    z = jnp.einsum('oc,bchw->bohw', conv_w, cat, precision='highest')
    z = z + conv_b[None, :, None, None]
    scale = gamma / jnp.sqrt(running_var + eps)
    z = scale[None, :, None, None] * (z - running_mean[None, :, None, None]) \
        + beta[None, :, None, None]
    return jnp.maximum(z, 0.0)


if __name__ == "__main__":
    key = jax.random.PRNGKey(0)
    kx, kw, kb, kg, kbe, km, kv = jax.random.split(key, 7)

    B, in_ch, H, W = 2, 4, 16, 16
    out_ch = 32
    eps = 1e-5

    x = jax.random.normal(kx, (B, in_ch, H, W), dtype=jnp.float32)

    # Conv2d(in_ch*4, out_ch, kernel_size=1) weight [out_ch, 4*in_ch] and bias.
    conv_w = 0.1 * jax.random.normal(kw, (out_ch, 4 * in_ch), dtype=jnp.float32)
    conv_b = 0.1 * jax.random.normal(kb, (out_ch,), dtype=jnp.float32)

    # BatchNorm2d(out_ch), eval mode.
    gamma = 1.0 + 0.1 * jax.random.normal(kg, (out_ch,), dtype=jnp.float32)
    beta = 0.1 * jax.random.normal(kbe, (out_ch,), dtype=jnp.float32)
    running_mean = 0.1 * jax.random.normal(km, (out_ch,), dtype=jnp.float32)
    running_var = 1.0 + 0.1 * jax.random.uniform(kv, (out_ch,), dtype=jnp.float32)

    out = down_wt_forward(x, conv_w, conv_b, gamma, beta,
                          running_mean, running_var, eps)
    out = jax.block_until_ready(out)
    assert out.shape == (B, out_ch, H // 2, W // 2), out.shape

    ref = _reference(x, conv_w, conv_b, gamma, beta, running_mean, running_var, eps)
    max_err = float(jnp.max(jnp.abs(out - ref)))
    assert max_err < 5e-2, f"max abs error vs reference: {max_err}"

    print("KERNEL_OK")
</pallas_src>

<mosaic_0001>
module attributes {stable_mosaic.version = 11 : i64} {
  func.func @_down_wt_kernel(%arg0: i32, %arg1: i32, %arg2: i32, %arg3: memref<1x16x128xbf16, #tpu.memory_space<vmem>>, %arg4: memref<32x16xbf16, #tpu.memory_space<vmem>>, %arg5: memref<32x1xf32, #tpu.memory_space<vmem>>, %arg6: memref<1x32x128xf32, #tpu.memory_space<vmem>>) attributes {dimension_semantics = [#tpu.dimension_semantics<parallel>, #tpu.dimension_semantics<parallel>, #tpu.dimension_semantics<parallel>], iteration_bounds = array<i64: 2, 1, 1>, scalar_prefetch = 0 : i64, scratch_operands = 0 : i64, tpu.core_type = #tpu.core_type<tc>, window_params = [{transform_indices = @transform_0, window_bounds = array<i64: 1, 16, 128>}, {transform_indices = @transform_1, window_bounds = array<i64: 32, 16>}, {transform_indices = @transform_2, window_bounds = array<i64: 32, 1>}, {transform_indices = @transform_3, window_bounds = array<i64: 1, 32, 128>}]} {
    %c0 = arith.constant 0 : index
    %c0_0 = arith.constant 0 : index
    %0 = vector.load %arg4[%c0, %c0_0] : memref<32x16xbf16, #tpu.memory_space<vmem>>, vector<32x16xbf16>
    %c0_1 = arith.constant 0 : index
    %c0_2 = arith.constant 0 : index
    %c0_3 = arith.constant 0 : index
    %1 = vector.load %arg3[%c0_1, %c0_2, %c0_3] : memref<1x16x128xbf16, #tpu.memory_space<vmem>>, vector<1x16x128xbf16>
    %2 = vector.shape_cast %1 : vector<1x16x128xbf16> to vector<16x128xbf16>
    %cst = arith.constant dense<0.000000e+00> : vector<32x128xf32>
    %3 = tpu.matmul %0, %2, %cst {dimension_numbers = #tpu.dot_dimension_numbers<[1], [0], [0], [1], [0, 0, 1, 1], [], []>} : vector<32x16xbf16>, vector<16x128xbf16>, vector<32x128xf32> -> vector<32x128xf32>
    %c0_4 = arith.constant 0 : index
    %c0_5 = arith.constant 0 : index
    %4 = vector.load %arg5[%c0_4, %c0_5] : memref<32x1xf32, #tpu.memory_space<vmem>>, vector<32x1xf32>
    %5 = vector.broadcast %4 : vector<32x1xf32> to vector<32x128xf32>
    %6 = arith.addf %3, %5 : vector<32x128xf32>
    %cst_6 = arith.constant 0.000000e+00 : f32
    %7 = vector.broadcast %cst_6 : f32 to vector<32x128xf32>
    %8 = arith.maximumf %6, %7 : vector<32x128xf32>
    %c0_7 = arith.constant 0 : index
    %c0_8 = arith.constant 0 : index
    %c0_9 = arith.constant 0 : index
    %9 = vector.load %arg6[%c0_7, %c0_8, %c0_9] : memref<1x32x128xf32, #tpu.memory_space<vmem>>, vector<1x32x128xf32>
    %10 = vector.shape_cast %9 : vector<1x32x128xf32> to vector<32x128xf32>
    %11 = vector.shape_cast %8 : vector<32x128xf32> to vector<1x32x128xf32>
    tpu.vector_store %arg6[%c0_7, %c0_8, %c0_9], %11 {strides = array<i32>} : memref<1x32x128xf32, #tpu.memory_space<vmem>>, vector<1x32x128xf32>,
    return
  }
  func.func @transform_0(%arg0: i32, %arg1: i32, %arg2: i32) -> (i32, i32, i32) {
    %c0_i32 = arith.constant 0 : i32
    %c0_i32_0 = arith.constant 0 : i32
    return %arg0, %c0_i32, %arg1 : i32, i32, i32
  }
  func.func @transform_1(%arg0: i32, %arg1: i32, %arg2: i32) -> (i32, i32) {
    %c0_i32 = arith.constant 0 : i32
    %c0_i32_0 = arith.constant 0 : i32
    return %arg2, %c0_i32 : i32, i32
  }
  func.func @transform_2(%arg0: i32, %arg1: i32, %arg2: i32) -> (i32, i32) {
    %c0_i32 = arith.constant 0 : i32
    %c0_i32_0 = arith.constant 0 : i32
    return %arg2, %c0_i32 : i32, i32
  }
  func.func @transform_3(%arg0: i32, %arg1: i32, %arg2: i32) -> (i32, i32, i32) {
    %c0_i32 = arith.constant 0 : i32
    return %arg0, %arg2, %arg1 : i32, i32, i32
  }
}

</mosaic_0001>

<llo_original>
// kernel: down_wt_forward.1
$region0: #{down_wt_forward.1}
  #allocation0 [shape = 'u32[]', space=smem, size = 0x4, offset = 0x4, fixed_abs, tag = 'smem constant byte address 0x4 - core index']
  #allocation1 [shape = 'u32[144,128]{1,0:T(1,128)}', space=vmem, size = 0x12000, scoped, tag = 'internal scratch']
  %s0 = inlined_call_operand.vmem [shape: bf16[2,16,128], index: 0, kind: input, shape index: {}]
  %s1 = inlined_call_operand.vmem [shape: bf16[32,16], index: 1, kind: input, shape index: {}]
  %s2 = inlined_call_operand.vmem [shape: f32[32,1], index: 2, kind: input, shape index: {}]
  %s3 = inlined_call_operand.vmem [shape: f32[2,32,128], index: 3, kind: output, shape index: {}]
  %s4 = sld [smem:[#allocation0]]
  $region45: #{down_wt_forward.1} parent=0
    _
  %s6 = ssub.s32 1, %s4
  %s7 = scalar_select 0, %s6, %s4
  loop: start=0, step=1, limit=4
  $region2: #{down_wt_forward.1} parent=0 // loop_pre_header
    _
  $region3: #{down_wt_forward.1} parent=0 // loop_header
    %s9 = sphi 0, %s13
    %p10 = scmp.ge.s32.totalorder %s9, 4
    %s16 = sphi 0, %s35
    %s17 = sphi 0, %s31
    %s18 = sphi 0, %s27
    %s19 = sphi 0, %s16
    %s20 = sphi 0, %s17
    %s21 = sphi 0, %s18
    %s22 = sphi 0, %s19
    %s23 = sphi 0, %s20
    %s24 = sphi 0, %s21
    %s40 = sphi 0, %s42
    %s43 = sphi 0, %s40
    %s44 = sphi 0, %s43
    %s60 = sphi 0, %s44
    %s66 = sphi 0, %s68
    %s69 = sphi 0, %s66
    %s70 = sphi 0, %s69
    %s86 = sphi 0, %s70
    %s92 = sphi 0, %s94
    %s95 = sphi 0, %s92
    %s96 = sphi 0, %s95
    %s112 = sphi 0, %s96
    %s122 = sphi 0, %s124
    %s125 = sphi 0, %s122
    %s126 = sphi 0, %s125
    %s142 = sphi 0, %s126
  $region4: #{down_wt_forward.1} parent=0 // loop_header_branch
    %12 = sbr.rel (%p10) target = $region8
  $region5: #{down_wt_forward.1} parent=0 // loop_body
    %s14 = ssub.s32 %s9, 1
    %s15 = ssub.s32 %s9, 2
    %s25 = sadd.s32 1, %s18
    %p26 = scmp.ge.s32.totalorder %s25, 1
    %s27 = scalar_select %p26, 0, %s25
    %s28 = sadd.s32 1, %s17
    %s29 = scalar_select %p26, %s28, %s17
    %p30 = scmp.ge.s32.totalorder %s29, 1
    %s31 = scalar_select %p30, 0, %s29
    %s32 = sadd.s32 1, %s16
    %s33 = scalar_select %p30, %s32, %s16
    %p34 = scmp.ge.s32.totalorder %s33, 2
    %s35 = scalar_select %p34, 0, %s33
    %s36 = ssub.s32 %s16, %s35
    %s37 = ssub.s32 %s17, %s31
    %s38 = sor.u32 %s36, %s37
    %p39 = scmp.eq.s32.totalorder %s38, 0
    %s41 = sadd.s32 %s40, 1
    %s42 = scalar_select %p39, %s40, %s41
    %p45 = pneg %p39
    %p46 = scmp.eq.s32.totalorder %s9, 1
    %p47 = por %p45, %p46
    %p48 = scmp.ne.s32.totalorder %s40, %s43
    %p49 = scmp.eq.s32.totalorder %s9, 0
    %p50 = por %p48, %p49
    %p51 = scmp.ne.s32.totalorder %s40, %s43
    %p52 = scmp.eq.s32.totalorder %s14, 1
    %p53 = por %p51, %p52
    %p54 = scmp.ne.s32.totalorder %s43, %s44
    %p55 = scmp.eq.s32.totalorder %s14, 0
    %p56 = por %p54, %p55
    %p57 = scmp.ne.s32.totalorder %s43, %s44
    %p58 = scmp.eq.s32.totalorder %s15, 1
    %p59 = por %p57, %p58
    %p61 = scmp.ne.s32.totalorder %s44, %s60
    %p62 = scmp.eq.s32.totalorder %s15, 0
    %p63 = por %p61, %p62
    %s64 = ssub.s32 %s18, %s27
    %p65 = scmp.eq.s32.totalorder %s64, 0
    %s67 = sadd.s32 %s66, 1
    %s68 = scalar_select %p65, %s66, %s67
    %p71 = pneg %p65
    %p72 = scmp.eq.s32.totalorder %s9, 1
    %p73 = por %p71, %p72
    %p74 = scmp.ne.s32.totalorder %s66, %s69
    %p75 = scmp.eq.s32.totalorder %s9, 0
    %p76 = por %p74, %p75
    %p77 = scmp.ne.s32.totalorder %s66, %s69
    %p78 = scmp.eq.s32.totalorder %s14, 1
    %p79 = por %p77, %p78
    %p80 = scmp.ne.s32.totalorder %s69, %s70
    %p81 = scmp.eq.s32.totalorder %s14, 0
    %p82 = por %p80, %p81
    %p83 = scmp.ne.s32.totalorder %s69, %s70
    %p84 = scmp.eq.s32.totalorder %s15, 1
    %p85 = por %p83, %p84
    %p87 = scmp.ne.s32.totalorder %s70, %s86
    %p88 = scmp.eq.s32.totalorder %s15, 0
    %p89 = por %p87, %p88
    %s90 = ssub.s32 %s18, %s27
    %p91 = scmp.eq.s32.totalorder %s90, 0
    %s93 = sadd.s32 %s92, 1
    %s94 = scalar_select %p91, %s92, %s93
    %p97 = pneg %p91
    %p98 = scmp.eq.s32.totalorder %s9, 1
    %p99 = por %p97, %p98
    %p100 = scmp.ne.s32.totalorder %s92, %s95
    %p101 = scmp.eq.s32.totalorder %s9, 0
    %p102 = por %p100, %p101
    %p103 = scmp.ne.s32.totalorder %s92, %s95
    %p104 = scmp.eq.s32.totalorder %s14, 1
    %p105 = por %p103, %p104
    %p106 = scmp.ne.s32.totalorder %s95, %s96
    %p107 = scmp.eq.s32.totalorder %s14, 0
    %p108 = por %p106, %p107
    %p109 = scmp.ne.s32.totalorder %s95, %s96
    %p110 = scmp.eq.s32.totalorder %s15, 1
    %p111 = por %p109, %p110
    %p113 = scmp.ne.s32.totalorder %s96, %s112
    %p114 = scmp.eq.s32.totalorder %s15, 0
    %p115 = por %p113, %p114
    %s116 = ssub.s32 %s16, %s35
    %s117 = ssub.s32 %s18, %s27
    %s118 = sor.u32 %s116, %s117
    %s119 = ssub.s32 %s17, %s31
    %s120 = sor.u32 %s118, %s119
    %p121 = scmp.eq.s32.totalorder %s120, 0
    %s123 = sadd.s32 %s122, 1
    %s124 = scalar_select %p121, %s122, %s123
    %p127 = pneg %p121
    %p128 = scmp.eq.s32.totalorder %s9, 1
    %p129 = por %p127, %p128
    %p130 = scmp.ne.s32.totalorder %s122, %s125
    %p131 = scmp.eq.s32.totalorder %s9, 0
    %p132 = por %p130, %p131
    %p133 = scmp.ne.s32.totalorder %s122, %s125
    %p134 = scmp.eq.s32.totalorder %s14, 1
    %p135 = por %p133, %p134
    %p136 = scmp.ne.s32.totalorder %s125, %s126
    %p137 = scmp.eq.s32.totalorder %s14, 0
    %p138 = por %p136, %p137
    %p139 = scmp.ne.s32.totalorder %s125, %s126
    %p140 = scmp.eq.s32.totalorder %s15, 1
    %p141 = por %p139, %p140
    %p143 = scmp.ne.s32.totalorder %s126, %s142
    %p144 = scmp.eq.s32.totalorder %s15, 0
    %p145 = por %p143, %p144
    %p146 = scmp.le.s32.totalorder 1, %s9
    %p147 = scmp.lt.s32.totalorder %s9, 3
    %p148 = pnand %p146, %p147
    %p149 = pneg %p148
    // Predicated region
    $region9: #{down_wt_forward.1} parent=5 // pred_check
      _
    $region10: #{down_wt_forward.1} parent=5 // pred_check_branch
      %151 = sbr.rel (%p148) target = $region12
    $region11: #{down_wt_forward.1} parent=5 // pred_region
      %s152 = ssub.s32 %s9, 1
      // Predicated region
      $region13: #{down_wt_forward.1} parent=11 // pred_check
        %p153 = pneg %p82
      $region14: #{down_wt_forward.1} parent=11 // pred_check_branch
        %155 = sbr.rel (%p153) target = $region16
      $region15: #{down_wt_forward.1} parent=11 // pred_region
        %s156 = smul.u32 4, %s21
        %p157 = scmp.lt.s32.totalorder %s156, 3
        %s158 = scalar_select %p157, %s156, 3
        %s159 = smul.addr %s158, 4
        %s160 = scalar_lea.vmem %s1, %s159
        %s161 = smul.u32 4, %s21
      $region16: #{down_wt_forward.1} parent=11 // pred_fallthru
        _
      // Predicated region
      $region17: #{down_wt_forward.1} parent=11 // pred_check
        %p162 = pneg %p108
      $region18: #{down_wt_forward.1} parent=11 // pred_check_branch
        %164 = sbr.rel (%p162) target = $region20
      $region19: #{down_wt_forward.1} parent=11 // pred_region
        %s165 = smul.u32 4, %s21
        %p166 = scmp.lt.s32.totalorder %s165, 3
        %s167 = scalar_select %p166, %s165, 3
        %s168 = smul.addr %s167, 8
        %s169 = scalar_lea.vmem %s2, %s168
        %s170 = smul.u32 4, %s21
      $region20: #{down_wt_forward.1} parent=11 // pred_fallthru
        _
    $region12: #{down_wt_forward.1} parent=5 // pred_fallthru
      _
    %p171 = scmp.lt.s32.totalorder %s9, 2
    // Predicated region
    $region21: #{down_wt_forward.1} parent=5 // pred_check
      %p172 = pneg %p171
    $region22: #{down_wt_forward.1} parent=5 // pred_check_branch
      %174 = sbr.rel (%p172) target = $region24
    $region23: #{down_wt_forward.1} parent=5 // pred_region
      // Predicated region
      $region25: #{down_wt_forward.1} parent=23 // pred_check
        %p175 = pneg %p50
      $region26: #{down_wt_forward.1} parent=23 // pred_check_branch
        %177 = sbr.rel (%p175) target = $region28
      $region27: #{down_wt_forward.1} parent=23 // pred_region
        %p178 = scmp.lt.s32.totalorder %s16, 1
        %s179 = scalar_select %p178, %s16, 1
        %p180 = scmp.lt.s32.totalorder %s17, 0
        %s181 = scalar_select %p180, %s17, 0
        %s182 = smul.addr %s179, 2
        %s183 = sadd.s32 %s181, %s182
        %s184 = smul.addr %s183, 4
        %s185 = scalar_lea.vmem %s0, %s184
      $region28: #{down_wt_forward.1} parent=23 // pred_fallthru
        _
    $region24: #{down_wt_forward.1} parent=5 // pred_fallthru
      _
    %p186 = scmp.le.s32.totalorder 1, %s9
    %p187 = scmp.lt.s32.totalorder %s9, 3
    %p188 = pnand %p186, %p187
    %p189 = pneg %p188
    // Predicated region
    $region29: #{down_wt_forward.1} parent=5 // pred_check
      _
    $region30: #{down_wt_forward.1} parent=5 // pred_check_branch
      %191 = sbr.rel (%p188) target = $region32
    $region31: #{down_wt_forward.1} parent=5 // pred_region
      %s192 = ssub.s32 %s9, 1
      %p193 = scmp.lt.s32.totalorder %s19, 1
      %s194 = scalar_select %p193, %s19, 1
      %p195 = scmp.lt.s32.totalorder %s20, 0
      %s196 = scalar_select %p195, %s20, 0
      %s197 = smul.addr %s194, 2
      %s198 = sadd.s32 %s196, %s197
      %s199 = smul.addr %s198, 4
      %s200 = scalar_lea.vmem %s0, %s199
      %p201 = pneg %p56
      %p202 = pneg %p53
      %s203 = smul.u32 4, %s21
      %p204 = scmp.lt.s32.totalorder %s203, 3
      %s205 = scalar_select %p204, %s203, 3
      %s206 = smul.addr %s205, 4
      %s207 = scalar_lea.vmem %s1, %s206
      %p208 = pneg %p82
      %p209 = pneg %p79
      %s210 = smul.u32 4, %s21
      %p211 = scmp.lt.s32.totalorder %s210, 3
      %s212 = scalar_select %p211, %s210, 3
      %s213 = smul.addr %s212, 8
      %s214 = scalar_lea.vmem %s2, %s213
      %p215 = pneg %p108
      %p216 = pneg %p105
      %p217 = pneg %p138
      %p218 = pneg %p135
      %s219 = smul.u32 4, %s21
      %p220 = scmp.lt.s32.totalorder %s19, 1
      %s221 = scalar_select %p220, %s19, 1
      %p222 = scmp.lt.s32.totalorder %s219, 3
      %s223 = scalar_select %p222, %s219, 3
      %p224 = scmp.lt.s32.totalorder %s20, 0
      %s225 = scalar_select %p224, %s20, 0
      %s226 = sadd.s32 %s225, %s223
      %s227 = smul.addr %s221, 4
      %s228 = sadd.s32 %s226, %s227
      %s229 = smul.addr %s228, 8
      %s230 = scalar_lea.vmem %s3, %s229
      %p231 = scmp.lt.s32.totalorder %s19, 1
      %s232 = scalar_select %p231, %s19, 1
      %p233 = scmp.lt.s32.totalorder %s20, 0
      %s234 = scalar_select %p233, %s20, 0
      %s235 = smul.addr %s232, 2
      %s236 = sadd.s32 %s234, %s235
      %s237 = smul.addr %s236, 4
      %s238 = scalar_lea.vmem %s0, %s237
      %s239 = smul.u32 4, %s21
      %p240 = scmp.lt.s32.totalorder %s239, 3
      %s241 = scalar_select %p240, %s239, 3
      %s242 = smul.addr %s241, 4
      %s243 = scalar_lea.vmem %s1, %s242
      %s244 = smul.u32 4, %s21
      %s245 = smul.u32 4, %s21
      %p246 = scmp.lt.s32.totalorder %s245, 3
      %s247 = scalar_select %p246, %s245, 3
      %s248 = smul.addr %s247, 8
      %s249 = scalar_lea.vmem %s2, %s248
      %s250 = smul.u32 4, %s21
      %s251 = smul.u32 4, %s21
      %p252 = scmp.lt.s32.totalorder %s19, 1
      %s253 = scalar_select %p252, %s19, 1
      %p254 = scmp.lt.s32.totalorder %s251, 3
      %s255 = scalar_select %p254, %s251, 3
      %p256 = scmp.lt.s32.totalorder %s20, 0
      %s257 = scalar_select %p256, %s20, 0
      %s258 = sadd.s32 %s257, %s255
      %s259 = smul.addr %s253, 4
      %s260 = sadd.s32 %s258, %s259
      %s261 = smul.addr %s260, 8
      %s262 = scalar_lea.vmem %s3, %s261
      %s263 = smul.u32 4, %s21
      %v265 = vld [vmem:[%s243] sm:$0xf]
      %v266 = vld [vmem:[%s243 + $0x4] sm:$0xf]
      %v267 = vld [vmem:[%s243 + $0x8] sm:$0xf]
      %v268 = vld [vmem:[%s243 + $0xc] sm:$0xf]
      %v269 = vld [vmem:[%s238] sm:$0xf]
      %v270 = vld [vmem:[%s238 + $0x4] sm:$0xf]
      %v271 = vld [vmem:[%s249] sm:$0xff]
      %v272 = vld [vmem:[%s249 + $0x8] sm:$0xff]
      %v273 = vld [vmem:[%s249 + $0x10] sm:$0xff]
      %v274 = vld [vmem:[%s249 + $0x18] sm:$0xff]
      %276 = vset.pattern.permute.xlu0 0
      %277 = vperm.xlu0 %276, %v271
      %v278 = vpop.permute.xlu0 %277
      %281 = vset.pattern.permute.xlu0 0
      %282 = vperm.xlu0 %281, %v272
      %v283 = vpop.permute.xlu0 %282
      %286 = vset.pattern.permute.xlu0 0
      %287 = vperm.xlu0 %286, %v273
      %v288 = vpop.permute.xlu0 %287
      %291 = vset.pattern.permute.xlu0 0
      %292 = vperm.xlu0 %291, %v274
      %v293 = vpop.permute.xlu0 %292
      %v299 = vunpack.c.l.b16 %v265
      %v300 = vunpack.c.l.b16 %v266
      %v301 = vunpack.c.l.b16 %v267
      %v302 = vunpack.c.l.b16 %v268
      %v303 = vpack.c.b16 %v300, %v299
      %v304 = vpack.c.b16 %v302, %v301
      %v307 = vunpack.c.l.b16 %v269
      %v308 = vunpack.c.l.b16 %v270
      %v309 = vpack.c.b16 %v308, %v307
      %vm311 = vcmask 130048
      %v313 = vsel %vm311, %v303, 0
      %v316 = vsel %vm311, %v304, 0
      %318 = vmatprep.subr.bf16.mxu0 0
      %319 = vmatpush1.bf16.msra.mxu0 %v309
      %320 = vmatprep.subr.bf16.mxu0 0
      %321 = vmatpush1.bf16.msra.mxu0 0
      %322 = vmatprep.subr.bf16.mxu0 0
      %323 = vmatpush1.bf16.msra.mxu0 0
      %324 = vmatprep.subr.bf16.mxu0 0
      %325 = vmatpush1.bf16.msra.mxu0 0
      %326 = vmatprep.subr.bf16.mxu0 0
      %327 = vmatpush1.bf16.msra.mxu0 0
      %328 = vmatprep.subr.bf16.mxu0 0
      %329 = vmatpush1.bf16.msra.mxu0 0
      %330 = vmatprep.subr.bf16.mxu0 0
      %331 = vmatpush1.bf16.msra.mxu0 0
      %332 = vmatprep.subr.bf16.mxu0 0
      %333 = vmatpush1.bf16.msra.mxu0 0
      %334 = vmatprep.subr.bf16.mxu0 0
      %335 = vmatpush1.bf16.msra.mxu0 0
      %336 = vmatprep.subr.bf16.mxu0 0
      %337 = vmatpush1.bf16.msra.mxu0 0
      %338 = vmatprep.subr.bf16.mxu0 0
      %339 = vmatpush1.bf16.msra.mxu0 0
      %340 = vmatprep.subr.bf16.mxu0 0
      %341 = vmatpush1.bf16.msra.mxu0 0
      %342 = vmatprep.subr.bf16.mxu0 0
      %343 = vmatpush1.bf16.msra.mxu0 0
      %344 = vmatprep.subr.bf16.mxu0 0
      %345 = vmatpush1.bf16.msra.mxu0 0
      %346 = vmatprep.subr.bf16.mxu0 0
      %347 = vmatpush1.bf16.msra.mxu0 0
      %348 = vmatprep.subr.bf16.mxu0 0
      %349 = vmatpush1.bf16.msra.mxu0 0
      %350 = vmatprep.mubr.bf16.mxu0 0
      %351 = vmatmul.mubr.bf16.gmra.mrb[0].mxu0 %v313
      %v352 = vpop.f32.mrb[0].mxu0
      %v353 = vadd.f32 %v278, %v352
      %v354 = vpop.f32.mrb[0].mxu0
      %v355 = vpop.f32.mrb[0].mxu0
      %v356 = vadd.f32 %v283, %v355
      %v357 = vpop.f32.mrb[0].mxu0
      %358 = vmatprep.mubr.bf16.mxu0 0
      %359 = vmatmul.mubr.bf16.gmra.mrb[0].mxu0 %v316
      %v360 = vpop.f32.mrb[0].mxu0
      %v361 = vadd.f32 %v288, %v360
      %v362 = vpop.f32.mrb[0].mxu0
      %v363 = vpop.f32.mrb[0].mxu0
      %v364 = vadd.f32 %v293, %v363
      %v365 = vpop.f32.mrb[0].mxu0
      %366 = vdwg.mxu0
      %v367 = vmax.f32 %v353, 0.0
      %v368 = vmax.f32 %v356, 0.0
      %v369 = vmax.f32 %v361, 0.0
      %v370 = vmax.f32 %v364, 0.0
      %371 = vst [vmem:[%s262] sm:$0xff] %v367
      %372 = vst [vmem:[%s262 + $0x8] sm:$0xff] %v368
      %373 = vst [vmem:[%s262 + $0x10] sm:$0xff] %v369
      %374 = vst [vmem:[%s262 + $0x18] sm:$0xff] %v370
      %s375 = smul.u32 4, %s21
      %p376 = scmp.lt.s32.totalorder %s19, 1
      %s377 = scalar_select %p376, %s19, 1
      %p378 = scmp.lt.s32.totalorder %s375, 3
      %s379 = scalar_select %p378, %s375, 3
      %p380 = scmp.lt.s32.totalorder %s20, 0
      %s381 = scalar_select %p380, %s20, 0
      %s382 = sadd.s32 %s381, %s379
      %s383 = smul.addr %s377, 4
      %s384 = sadd.s32 %s382, %s383
      %s385 = smul.addr %s384, 8
      %s386 = scalar_lea.vmem %s3, %s385
      // Predicated region
      $region33: #{down_wt_forward.1} parent=31 // pred_check
        %p387 = pneg %p135
      $region34: #{down_wt_forward.1} parent=31 // pred_check_branch
        %389 = sbr.rel (%p387) target = $region36
      $region35: #{down_wt_forward.1} parent=31 // pred_region
        %s390 = smul.u32 4, %s21
      $region36: #{down_wt_forward.1} parent=31 // pred_fallthru
        _
    $region32: #{down_wt_forward.1} parent=5 // pred_fallthru
      _
    %p391 = scmp.le.s32.totalorder 2, %s9
    // Predicated region
    $region37: #{down_wt_forward.1} parent=5 // pred_check
      %p392 = pneg %p391
    $region38: #{down_wt_forward.1} parent=5 // pred_check_branch
      %394 = sbr.rel (%p392) target = $region40
    $region39: #{down_wt_forward.1} parent=5 // pred_region
      %s395 = ssub.s32 %s9, 2
      // Predicated region
      $region41: #{down_wt_forward.1} parent=39 // pred_check
        %p396 = pneg %p141
      $region42: #{down_wt_forward.1} parent=39 // pred_check_branch
        %398 = sbr.rel (%p396) target = $region44
      $region43: #{down_wt_forward.1} parent=39 // pred_region
        %s399 = smul.u32 4, %s24
        %p400 = scmp.lt.s32.totalorder %s22, 1
        %s401 = scalar_select %p400, %s22, 1
        %p402 = scmp.lt.s32.totalorder %s399, 3
        %s403 = scalar_select %p402, %s399, 3
        %p404 = scmp.lt.s32.totalorder %s23, 0
        %s405 = scalar_select %p404, %s23, 0
        %s406 = sadd.s32 %s405, %s403
        %s407 = smul.addr %s401, 4
        %s408 = sadd.s32 %s406, %s407
        %s409 = smul.addr %s408, 8
        %s410 = scalar_lea.vmem %s3, %s409
      $region44: #{down_wt_forward.1} parent=39 // pred_fallthru
        _
    $region40: #{down_wt_forward.1} parent=5 // pred_fallthru
      _
  $region6: #{down_wt_forward.1} parent=0 // loop_footer
    %s13 = sadd.s32 1, %s9
  $region7: #{down_wt_forward.1} parent=0 // loop_footer_branch
    %8 = sbr.rel target = $region3
  $region8: #{down_wt_forward.1} parent=0 // loop_exit
    _

</llo_original>
